<compile_context>
chip_gen: v5e
topology: v5e:2x2
jax: 0.10.0
libtpu: 0.0.40
codegen_flags: <defaults>
</compile_context>

<pallas_src>
import jax
import jax.numpy as jnp
from jax.experimental import pallas as pl
from jax.experimental.pallas import tpu as pltpu


HID1, HID2, N_CLASSES = 64, 32, 2
OUT_PAD = 128  # lane-dense padded width of the fc3 output


def _round_up(n, m):
    return ((n + m - 1) // m) * m


def mlp_kernel(x_ref, w1_ref, b1_ref, w2_ref, b2_ref, w3_ref, b3_ref, o_ref):
    """One (tile_b, in_dim) block of rows through fc1->ReLU->fc2->ReLU->fc3.

    Weights/biases are full-array resident blocks; all matmuls accumulate in f32
    on the MXU. Biases are (1, N) and broadcast implicitly (no per-step reshape).
    """
    h1 = jnp.dot(x_ref[...], w1_ref[...], preferred_element_type=jnp.float32)
    h1 = jnp.maximum(h1 + b1_ref[...], 0.0)
    h2 = jnp.dot(h1, w2_ref[...], preferred_element_type=jnp.float32)
    h2 = jnp.maximum(h2 + b2_ref[...], 0.0)
    # fc3 width is padded to OUT_PAD lanes -> single unmasked lane-dense store.
    o_ref[...] = (
        jnp.dot(h2, w3_ref[...], preferred_element_type=jnp.float32) + b3_ref[...]
    )


def depression_model_forward(x, params, *, tile_b=512):
    """3-layer MLP forward in a single batch-gridded Pallas kernel."""
    w1, b1, w2, b2, w3, b3 = params
    batch, in_dim = x.shape
    n_out = w3.shape[1]

    # --- lane-dense output: zero-pad fc3 from width 2 to 128 (sliced off below) ---
    w3p = jnp.zeros((w3.shape[0], OUT_PAD), w3.dtype).at[:, :n_out].set(w3)
    b3p = jnp.zeros((1, OUT_PAD), b3.dtype).at[:, :n_out].set(b3)

    # --- batch grid: tile_b rows per grid step, multiple of 8 (f32 sublane) ---
    tile_b = int(max(8, min(tile_b, _round_up(batch, 8))))
    tile_b = _round_up(tile_b, 8)
    padded_batch = _round_up(batch, tile_b)
    if padded_batch != batch:
        x = jnp.pad(x, ((0, padded_batch - batch), (0, 0)))
    grid = (padded_batch // tile_b,)

    # x / out stream per grid step; weights & biases stay resident across steps.
    x_spec = pl.BlockSpec((tile_b, in_dim), lambda i: (i, 0))
    out_spec = pl.BlockSpec((tile_b, OUT_PAD), lambda i: (i, 0))

    def resident(shape):
        return pl.BlockSpec(shape, lambda i: (0, 0))

    flops = 2 * padded_batch * (in_dim * HID1 + HID1 * HID2 + HID2 * OUT_PAD)
    bytes_accessed = 4 * (
        padded_batch * in_dim
        + padded_batch * OUT_PAD
        + w1.size + b1.size + w2.size + b2.size + w3p.size + b3p.size
    )

    out_padded = pl.pallas_call(
        mlp_kernel,
        out_shape=jax.ShapeDtypeStruct((padded_batch, OUT_PAD), jnp.float32),
        grid=grid,
        in_specs=[
            x_spec,
            resident(w1.shape),
            resident(b1.shape),
            resident(w2.shape),
            resident(b2.shape),
            resident(w3p.shape),
            resident(b3p.shape),
        ],
        out_specs=out_spec,
        compiler_params=pltpu.CompilerParams(
            dimension_semantics=("parallel",),
        ),
        cost_estimate=pl.CostEstimate(
            flops=flops, transcendentals=0, bytes_accessed=bytes_accessed
        ),
    )(x, w1, b1, w2, b2, w3p, b3p)

    return out_padded[:batch, :n_out]


def init_params(key, input_dim):
    """Deterministic synthetic parameters matching DepressionModel.__init__ shapes."""
    k1, k2, k3, k4, k5, k6 = jax.random.split(key, 6)
    # PyTorch nn.Linear stores weight as [out, in]; we keep [in, out] for x @ W.
    w1 = jax.random.normal(k1, (input_dim, HID1), jnp.float32) * 0.1
    b1 = jax.random.normal(k2, (1, HID1), jnp.float32) * 0.1
    w2 = jax.random.normal(k3, (HID1, HID2), jnp.float32) * 0.1
    b2 = jax.random.normal(k4, (1, HID2), jnp.float32) * 0.1
    w3 = jax.random.normal(k5, (HID2, N_CLASSES), jnp.float32) * 0.1
    b3 = jax.random.normal(k6, (1, N_CLASSES), jnp.float32) * 0.1
    return (w1, b1, w2, b2, w3, b3)


def reference_forward(x, params):
    """Plain-JAX reference of the same forward pass (for sanity checking)."""
    w1, b1, w2, b2, w3, b3 = params
    h1 = jnp.maximum(x @ w1 + b1, 0.0)
    h2 = jnp.maximum(h1 @ w2 + b2, 0.0)
    return h2 @ w3 + b3


if __name__ == "__main__":
    key = jax.random.PRNGKey(0)
    kx, kp, kx2 = jax.random.split(key, 3)

    # Small case (matches the module's intended usage; single grid step).
    batch, input_dim = 8, 16
    x = jax.random.normal(kx, (batch, input_dim), jnp.float32)
    params = init_params(kp, input_dim)

    out = depression_model_forward(x, params)
    out = jax.block_until_ready(out)
    ref = reference_forward(x, params)
    assert out.shape == (batch, N_CLASSES)
    assert jnp.allclose(out, ref, atol=1e-5, rtol=1e-5)

    # Larger, non-multiple-of-tile batch to exercise the batch grid + padding path.
    big_batch = 1000
    x2 = jax.random.normal(kx2, (big_batch, input_dim), jnp.float32)
    out2 = jax.block_until_ready(depression_model_forward(x2, params, tile_b=512))
    ref2 = reference_forward(x2, params)
    assert out2.shape == (big_batch, N_CLASSES)
    assert jnp.allclose(out2, ref2, atol=1e-4, rtol=1e-4)

    print("KERNEL_OK")
</pallas_src>

<mosaic_0001>
module attributes {stable_mosaic.version = 11 : i64} {
  func.func @mlp_kernel(%arg0: i32, %arg1: memref<8x16xf32, #tpu.memory_space<vmem>>, %arg2: memref<16x64xf32, #tpu.memory_space<vmem>>, %arg3: memref<1x64xf32, #tpu.memory_space<vmem>>, %arg4: memref<64x32xf32, #tpu.memory_space<vmem>>, %arg5: memref<1x32xf32, #tpu.memory_space<vmem>>, %arg6: memref<32x128xf32, #tpu.memory_space<vmem>>, %arg7: memref<1x128xf32, #tpu.memory_space<vmem>>, %arg8: memref<8x128xf32, #tpu.memory_space<vmem>>) attributes {dimension_semantics = [#tpu.dimension_semantics<parallel>], iteration_bounds = array<i64: 1>, scalar_prefetch = 0 : i64, scratch_operands = 0 : i64, tpu.core_type = #tpu.core_type<tc>, window_params = [{transform_indices = @transform_0, window_bounds = array<i64: 8, 16>}, {pipeline_mode = #tpu.pipeline_mode<synchronous>, transform_indices = @transform_1, window_bounds = array<i64: 16, 64>}, {pipeline_mode = #tpu.pipeline_mode<synchronous>, transform_indices = @transform_2, window_bounds = array<i64: 1, 64>}, {pipeline_mode = #tpu.pipeline_mode<synchronous>, transform_indices = @transform_3, window_bounds = array<i64: 64, 32>}, {pipeline_mode = #tpu.pipeline_mode<synchronous>, transform_indices = @transform_4, window_bounds = array<i64: 1, 32>}, {pipeline_mode = #tpu.pipeline_mode<synchronous>, transform_indices = @transform_5, window_bounds = array<i64: 32, 128>}, {pipeline_mode = #tpu.pipeline_mode<synchronous>, transform_indices = @transform_6, window_bounds = array<i64: 1, 128>}, {transform_indices = @transform_7, window_bounds = array<i64: 8, 128>}]} {
    %c0 = arith.constant 0 : index
    %c0_0 = arith.constant 0 : index
    %0 = vector.load %arg1[%c0, %c0_0] : memref<8x16xf32, #tpu.memory_space<vmem>>, vector<8x16xf32>
    %c0_1 = arith.constant 0 : index
    %c0_2 = arith.constant 0 : index
    %1 = vector.load %arg2[%c0_1, %c0_2] : memref<16x64xf32, #tpu.memory_space<vmem>>, vector<16x64xf32>
    %cst = arith.constant dense<0.000000e+00> : vector<8x64xf32>
    %2 = tpu.matmul %0, %1, %cst {dimension_numbers = #tpu.dot_dimension_numbers<[1], [0], [0], [1], [0, 0, 1, 1], [], []>} : vector<8x16xf32>, vector<16x64xf32>, vector<8x64xf32> -> vector<8x64xf32>
    %c0_3 = arith.constant 0 : index
    %c0_4 = arith.constant 0 : index
    %3 = vector.load %arg3[%c0_3, %c0_4] : memref<1x64xf32, #tpu.memory_space<vmem>>, vector<1x64xf32>
    %4 = vector.broadcast %3 : vector<1x64xf32> to vector<8x64xf32>
    %5 = arith.addf %2, %4 : vector<8x64xf32>
    %cst_5 = arith.constant 0.000000e+00 : f32
    %6 = vector.broadcast %cst_5 : f32 to vector<8x64xf32>
    %7 = arith.maximumf %5, %6 : vector<8x64xf32>
    %c0_6 = arith.constant 0 : index
    %c0_7 = arith.constant 0 : index
    %8 = vector.load %arg4[%c0_6, %c0_7] : memref<64x32xf32, #tpu.memory_space<vmem>>, vector<64x32xf32>
    %cst_8 = arith.constant dense<0.000000e+00> : vector<8x32xf32>
    %9 = tpu.matmul %7, %8, %cst_8 {dimension_numbers = #tpu.dot_dimension_numbers<[1], [0], [0], [1], [0, 0, 1, 1], [], []>} : vector<8x64xf32>, vector<64x32xf32>, vector<8x32xf32> -> vector<8x32xf32>
    %c0_9 = arith.constant 0 : index
    %c0_10 = arith.constant 0 : index
    %10 = vector.load %arg5[%c0_9, %c0_10] : memref<1x32xf32, #tpu.memory_space<vmem>>, vector<1x32xf32>
    %11 = vector.broadcast %10 : vector<1x32xf32> to vector<8x32xf32>
    %12 = arith.addf %9, %11 : vector<8x32xf32>
    %cst_11 = arith.constant 0.000000e+00 : f32
    %13 = vector.broadcast %cst_11 : f32 to vector<8x32xf32>
    %14 = arith.maximumf %12, %13 : vector<8x32xf32>
    %c0_12 = arith.constant 0 : index
    %c0_13 = arith.constant 0 : index
    %15 = vector.load %arg6[%c0_12, %c0_13] : memref<32x128xf32, #tpu.memory_space<vmem>>, vector<32x128xf32>
    %cst_14 = arith.constant dense<0.000000e+00> : vector<8x128xf32>
    %16 = tpu.matmul %14, %15, %cst_14 {dimension_numbers = #tpu.dot_dimension_numbers<[1], [0], [0], [1], [0, 0, 1, 1], [], []>} : vector<8x32xf32>, vector<32x128xf32>, vector<8x128xf32> -> vector<8x128xf32>
    %c0_15 = arith.constant 0 : index
    %c0_16 = arith.constant 0 : index
    %17 = vector.load %arg7[%c0_15, %c0_16] : memref<1x128xf32, #tpu.memory_space<vmem>>, vector<1x128xf32>
    %18 = vector.broadcast %17 : vector<1x128xf32> to vector<8x128xf32>
    %19 = arith.addf %16, %18 : vector<8x128xf32>
    %c0_17 = arith.constant 0 : index
    %c0_18 = arith.constant 0 : index
    %20 = vector.load %arg8[%c0_17, %c0_18] : memref<8x128xf32, #tpu.memory_space<vmem>>, vector<8x128xf32>
    tpu.vector_store %arg8[%c0_17, %c0_18], %19 {strides = array<i32>} : memref<8x128xf32, #tpu.memory_space<vmem>>, vector<8x128xf32>,
    return
  }
  func.func @transform_0(%arg0: i32) -> (i32, i32) {
    %c0_i32 = arith.constant 0 : i32
    %c0_i32_0 = arith.constant 0 : i32
    return %arg0, %c0_i32 : i32, i32
  }
  func.func @transform_1(%arg0: i32) -> (i32, i32) {
    %c0_i32 = arith.constant 0 : i32
    %c0_i32_0 = arith.constant 0 : i32
    %c0_i32_1 = arith.constant 0 : i32
    return %c0_i32, %c0_i32_0 : i32, i32
  }
  func.func @transform_2(%arg0: i32) -> (i32, i32) {
    %c0_i32 = arith.constant 0 : i32
    %c0_i32_0 = arith.constant 0 : i32
    %c0_i32_1 = arith.constant 0 : i32
    return %c0_i32, %c0_i32_0 : i32, i32
  }
  func.func @transform_3(%arg0: i32) -> (i32, i32) {
    %c0_i32 = arith.constant 0 : i32
    %c0_i32_0 = arith.constant 0 : i32
    %c0_i32_1 = arith.constant 0 : i32
    return %c0_i32, %c0_i32_0 : i32, i32
  }
  func.func @transform_4(%arg0: i32) -> (i32, i32) {
    %c0_i32 = arith.constant 0 : i32
    %c0_i32_0 = arith.constant 0 : i32
    %c0_i32_1 = arith.constant 0 : i32
    return %c0_i32, %c0_i32_0 : i32, i32
  }
  func.func @transform_5(%arg0: i32) -> (i32, i32) {
    %c0_i32 = arith.constant 0 : i32
    %c0_i32_0 = arith.constant 0 : i32
    %c0_i32_1 = arith.constant 0 : i32
    return %c0_i32, %c0_i32_0 : i32, i32
  }
  func.func @transform_6(%arg0: i32) -> (i32, i32) {
    %c0_i32 = arith.constant 0 : i32
    %c0_i32_0 = arith.constant 0 : i32
    %c0_i32_1 = arith.constant 0 : i32
    return %c0_i32, %c0_i32_0 : i32, i32
  }
  func.func @transform_7(%arg0: i32) -> (i32, i32) {
    %c0_i32 = arith.constant 0 : i32
    %c0_i32_0 = arith.constant 0 : i32
    return %arg0, %c0_i32 : i32, i32
  }
}

</mosaic_0001>

<llo_original>
// kernel: tpu_custom_call.1
$region0: #{tpu_custom_call.1}
  #allocation0 [shape = 'u32[]', space=smem, size = 0x4, offset = 0x4, fixed_abs, tag = 'smem constant byte address 0x4 - core index']
  #allocation1 [shape = 'u32[72,128]{1,0:T(1,128)}', space=vmem, size = 0x9000, scoped, tag = 'internal scratch']
  %s0 = inlined_call_operand.vmem [shape: f32[8,16], index: 0, kind: input, shape index: {}]
  %s1 = inlined_call_operand.vmem [shape: f32[16,64], index: 1, kind: input, shape index: {}]
  %s2 = inlined_call_operand.vmem [shape: f32[1,64], index: 2, kind: input, shape index: {}]
  %s3 = inlined_call_operand.vmem [shape: f32[64,32], index: 3, kind: input, shape index: {}]
  %s4 = inlined_call_operand.vmem [shape: f32[1,32], index: 4, kind: input, shape index: {}]
  %s5 = inlined_call_operand.vmem [shape: f32[32,128], index: 5, kind: input, shape index: {}]
  %s6 = inlined_call_operand.vmem [shape: f32[1,128], index: 6, kind: input, shape index: {}]
  %s7 = inlined_call_operand.hbm [shape: f32[8,128], index: 7, kind: output, shape index: {}]
  %s8 = sld [smem:[#allocation0]]
  $region38: #{tpu_custom_call.1} parent=0
    _
  %s10 = ssub.s32 1, %s8
  %s11 = scalar_select 0, %s10, %s8
  $region1: #{tpu_custom_call.1} parent=0
    #allocation2 [shape = 'u8[4096]{0}', space=vmem, size = 0x1000, scoped, tag = 'output window, operand 0, single buffered']
    #allocation3 [shape = 's32[1]{0}', space=sflag, size = 0x4, scoped, tag = 'scoped memory for tpu_custom_call.1']
    %12 = vsyncpa [#allocation3], 0
    // Predicated region
    $region2: #{tpu_custom_call.1} parent=1 // pred_check
      _
    $region3: #{tpu_custom_call.1} parent=1 // pred_check_branch
      %14 = sbr.rel (0) target = $region5
    $region4: #{tpu_custom_call.1} parent=1 // pred_region
      _
    $region5: #{tpu_custom_call.1} parent=1 // pred_fallthru
      _
    // Predicated region
    $region6: #{tpu_custom_call.1} parent=1 // pred_check
      _
    $region7: #{tpu_custom_call.1} parent=1 // pred_check_branch
      %16 = sbr.rel (0) target = $region9
    $region8: #{tpu_custom_call.1} parent=1 // pred_region
      _
    $region9: #{tpu_custom_call.1} parent=1 // pred_fallthru
      _
    // Predicated region
    $region10: #{tpu_custom_call.1} parent=1 // pred_check
      _
    $region11: #{tpu_custom_call.1} parent=1 // pred_check_branch
      %18 = sbr.rel (0) target = $region13
    $region12: #{tpu_custom_call.1} parent=1 // pred_region
      _
    $region13: #{tpu_custom_call.1} parent=1 // pred_fallthru
      _
    // Predicated region
    $region14: #{tpu_custom_call.1} parent=1 // pred_check
      _
    $region15: #{tpu_custom_call.1} parent=1 // pred_check_branch
      %20 = sbr.rel (0) target = $region17
    $region16: #{tpu_custom_call.1} parent=1 // pred_region
      _
    $region17: #{tpu_custom_call.1} parent=1 // pred_fallthru
      _
    // Predicated region
    $region18: #{tpu_custom_call.1} parent=1 // pred_check
      _
    $region19: #{tpu_custom_call.1} parent=1 // pred_check_branch
      %22 = sbr.rel (0) target = $region21
    $region20: #{tpu_custom_call.1} parent=1 // pred_region
      _
    $region21: #{tpu_custom_call.1} parent=1 // pred_fallthru
      _
    // Predicated region
    $region22: #{tpu_custom_call.1} parent=1 // pred_check
      _
    $region23: #{tpu_custom_call.1} parent=1 // pred_check_branch
      %24 = sbr.rel (0) target = $region25
    $region24: #{tpu_custom_call.1} parent=1 // pred_region
      _
    $region25: #{tpu_custom_call.1} parent=1 // pred_fallthru
      _
    // Predicated region
    $region26: #{tpu_custom_call.1} parent=1 // pred_check
      _
    $region27: #{tpu_custom_call.1} parent=1 // pred_check_branch
      %26 = sbr.rel (0) target = $region29
    $region28: #{tpu_custom_call.1} parent=1 // pred_region
      _
    $region29: #{tpu_custom_call.1} parent=1 // pred_fallthru
      _
    %v27 = vld [vmem:[%s0] sm:$0xff]
    %v28 = vld [vmem:[%s1] sm:$0xff]
    %v29 = vld [vmem:[%s1 + $0x8] sm:$0xff]
    %v30 = vld [vmem:[%s2] sm:$0x1]
    %v32 = vperm.slane %v30, 0
    %vm34 = vcmask 130048
    %v36 = vsel %vm34, %v27, 0
    %38 = vmatpush.msra.mxu0 0.0
    %39 = vmatpush.msra.mxu0 0.0
    %40 = vmatpush.msra.mxu0 0.0
    %41 = vmatpush.msra.mxu0 0.0
    %42 = vmatpush.msra.mxu0 0.0
    %43 = vmatpush.msra.mxu0 0.0
    %44 = vmatpush.msra.mxu0 0.0
    %45 = vmatpush.msra.mxu0 0.0
    %46 = vmatpush.msra.mxu0 0.0
    %47 = vmatpush.msra.mxu0 0.0
    %48 = vmatpush.msra.mxu0 0.0
    %49 = vmatpush.msra.mxu0 0.0
    %50 = vmatpush.msra.mxu0 0.0
    %51 = vmatpush.msra.mxu0 0.0
    %52 = vmatpush.msra.mxu0 %v29
    %53 = vmatpush.msra.mxu0 %v28
    %54 = vmatmul.f32.gmra.mxu0 %v36
    %v55 = vpop.f32.mrf.mxu0
    %v56 = vadd.f32 %v32, %v55
    %57 = vdwg.mxu0
    %v58 = vmax.f32 %v56, 0.0
    %v59 = vld [vmem:[%s3] sm:$0xff]
    %v60 = vld [vmem:[%s3 + $0x8] sm:$0xff]
    %v61 = vld [vmem:[%s3 + $0x10] sm:$0xff]
    %v62 = vld [vmem:[%s3 + $0x18] sm:$0xff]
    %v63 = vld [vmem:[%s3 + $0x20] sm:$0xff]
    %v64 = vld [vmem:[%s3 + $0x28] sm:$0xff]
    %v65 = vld [vmem:[%s3 + $0x30] sm:$0xff]
    %v66 = vld [vmem:[%s3 + $0x38] sm:$0xff]
    %v67 = vld [vmem:[%s4] sm:$0x1]
    %v69 = vperm.slane %v67, 0
    %vm71 = vcmask 523264
    %v73 = vsel %vm71, %v58, 0
    %75 = vmatpush.msra.mxu0 0.0
    %76 = vmatpush.msra.mxu0 0.0
    %77 = vmatpush.msra.mxu0 0.0
    %78 = vmatpush.msra.mxu0 0.0
    %79 = vmatpush.msra.mxu0 0.0
    %80 = vmatpush.msra.mxu0 0.0
    %81 = vmatpush.msra.mxu0 0.0
    %82 = vmatpush.msra.mxu0 0.0
    %83 = vmatpush.msra.mxu0 %v66
    %84 = vmatpush.msra.mxu0 %v65
    %85 = vmatpush.msra.mxu0 %v64
    %86 = vmatpush.msra.mxu0 %v63
    %87 = vmatpush.msra.mxu0 %v62
    %88 = vmatpush.msra.mxu0 %v61
    %89 = vmatpush.msra.mxu0 %v60
    %90 = vmatpush.msra.mxu0 %v59
    %91 = vmatmul.f32.gmra.mxu0 %v73
    %v92 = vpop.f32.mrf.mxu0
    %v93 = vadd.f32 %v69, %v92
    %94 = vdwg.mxu0
    %v95 = vmax.f32 %v93, 0.0
    %v96 = vld [vmem:[%s5] sm:$0xff]
    %v97 = vld [vmem:[%s5 + $0x8] sm:$0xff]
    %v98 = vld [vmem:[%s5 + $0x10] sm:$0xff]
    %v99 = vld [vmem:[%s5 + $0x18] sm:$0xff]
    %v100 = vld [vmem:[%s6] sm:$0x1]
    %v102 = vperm.slane %v100, 0
    %vm104 = vcmask 261120
    %v106 = vsel %vm104, %v95, 0
    %108 = vmatpush.msra.mxu0 0.0
    %109 = vmatpush.msra.mxu0 0.0
    %110 = vmatpush.msra.mxu0 0.0
    %111 = vmatpush.msra.mxu0 0.0
    %112 = vmatpush.msra.mxu0 0.0
    %113 = vmatpush.msra.mxu0 0.0
    %114 = vmatpush.msra.mxu0 0.0
    %115 = vmatpush.msra.mxu0 0.0
    %116 = vmatpush.msra.mxu0 0.0
    %117 = vmatpush.msra.mxu0 0.0
    %118 = vmatpush.msra.mxu0 0.0
    %119 = vmatpush.msra.mxu0 0.0
    %120 = vmatpush.msra.mxu0 %v99
    %121 = vmatpush.msra.mxu0 %v98
    %122 = vmatpush.msra.mxu0 %v97
    %123 = vmatpush.msra.mxu0 %v96
    %124 = vmatmul.f32.gmra.mxu0 %v106
    %v125 = vpop.f32.mrf.mxu0
    %v126 = vadd.f32 %v102, %v125
    %127 = vdwg.mxu0
    %128 = vst [vmem:[#allocation2] sm:$0xff] %v126
    // Predicated region
    $region30: #{tpu_custom_call.1} parent=1 // pred_check
      _
    $region31: #{tpu_custom_call.1} parent=1 // pred_check_branch
      %130 = sbr.rel (0) target = $region33
    $region32: #{tpu_custom_call.1} parent=1 // pred_region
      %132 = vsyncadd [#allocation3], 0
      %s134 = sshll.u32 [#allocation2], 4
      %s135 = int_to_ptr.vmem [resolvable:$true] %s134
      %s136 = sshll.u32 %s7, 4
      %s137 = int_to_ptr.hbm [resolvable:$true] %s136
      %139 = dma.vmem_to_hbm [thread:$0]  %s135, 128, %s137, [#allocation3]
    $region33: #{tpu_custom_call.1} parent=1 // pred_fallthru
      _
    // Predicated region
    $region34: #{tpu_custom_call.1} parent=1 // pred_check
      _
    $region35: #{tpu_custom_call.1} parent=1 // pred_check_branch
      %141 = sbr.rel (0) target = $region37
    $region36: #{tpu_custom_call.1} parent=1 // pred_region
      %143 = dma.done [#allocation3], 128
    $region37: #{tpu_custom_call.1} parent=1 // pred_fallthru
      _
    %144 = vsyncpa [#allocation3], 1

</llo_original>
